<compile_context>
chip_gen: v7x
topology: tpu7x:2x2x1
jax: 0.10.0
libtpu: 0.0.40
codegen_flags: <defaults>
</compile_context>

<pallas_src>
import functools

import jax
import jax.numpy as jnp
from jax.experimental import pallas as pl
from jax.experimental.pallas import tpu as pltpu

_EPS = 1e-5
_LANE = 128


def _round_up(v, m):
    return ((v + m - 1) // m) * m


# ----------------------------------------------------------------------------
# Kernels
# ----------------------------------------------------------------------------
def _conv1x1_bn_kernel(x_ref, w_ref, sh_ref, o_ref):
    # x_ref : (1, Cin, tl)   w_ref : (Cout, Cin)   sh_ref : (Cout, 1)
    # o_ref : (1, Cout, tl)
    y = jnp.dot(w_ref[...], x_ref[0], preferred_element_type=jnp.float32)
    o_ref[0] = (y + sh_ref[...]).astype(o_ref.dtype)


def _conv1x1_bn_small_kernel(x_ref, w_ref, sh_ref, o_ref):
    # Single-grid-step path: everything resident.
    # x_ref : (N, Cin, L)   o_ref : (N, Cout, L)
    w = w_ref[...]
    sh = sh_ref[...]
    for n in range(x_ref.shape[0]):  # N is static -> unrolled
        y = jnp.dot(w, x_ref[n], preferred_element_type=jnp.float32)
        o_ref[n] = (y + sh).astype(o_ref.dtype)


# ----------------------------------------------------------------------------
# Tile selection: VMEM-budget driven, 128-multiple lane tiles.
# ----------------------------------------------------------------------------
def _choose_tile_l(L, cin, cout, x_bytes, out_bytes,
                   *, n_x_buf, n_out_buf, budget_bytes):
    per_col = n_x_buf * cin * x_bytes + n_out_buf * cout * out_bytes
    tl = budget_bytes // max(per_col, 1)
    tl = (tl // _LANE) * _LANE
    return max(tl, _LANE)


# ----------------------------------------------------------------------------
# Wrapper
# ----------------------------------------------------------------------------
def conv1x1_bn_pallas(x, w_folded, shift, *, compute_dtype=None,
                      vmem_budget_bytes=16 * 1024 * 1024,
                      small_path_bytes=2 * 1024 * 1024):
    """x: (N, Cin, H, W) NCHW.  w_folded: (Cout, Cin[,1,1]) with BN scale folded in.
    shift: (Cout,) folded BN shift.  Returns (N, Cout, H, W)."""
    N, Cin, H, W = x.shape
    Cout = w_folded.shape[0]
    L = H * W

    cdt = x.dtype if compute_dtype is None else jnp.dtype(compute_dtype)
    out_dtype = cdt

    x2 = x.reshape(N, Cin, L).astype(cdt)
    w2 = w_folded.reshape(Cout, Cin).astype(cdt)
    sh = jnp.asarray(shift, jnp.float32).reshape(Cout, 1)

    xb = jnp.dtype(cdt).itemsize
    ob = jnp.dtype(out_dtype).itemsize

    # ---- tiny-problem path: one grid step, full-extent blocks -------------
    total_bytes = (N * Cin * L * xb + N * Cout * L * ob
                   + Cout * Cin * xb + Cout * 4)
    if total_bytes <= small_path_bytes:
        out = pl.pallas_call(
            _conv1x1_bn_small_kernel,
            out_shape=jax.ShapeDtypeStruct((N, Cout, L), out_dtype),
            grid=(1,),
            in_specs=[
                pl.BlockSpec((N, Cin, L), lambda i: (0, 0, 0)),
                pl.BlockSpec((Cout, Cin), lambda i: (0, 0)),
                pl.BlockSpec((Cout, 1), lambda i: (0, 0)),
            ],
            out_specs=pl.BlockSpec((N, Cout, L), lambda i: (0, 0, 0)),
            compiler_params=pltpu.CompilerParams(
                dimension_semantics=("arbitrary",)),
        )(x2, w2, sh)
        return out.reshape(N, Cout, H, W)

    # ---- pipelined tiled path ---------------------------------------------
    n_x_buf = 3   # pl.Buffered(3) on the streamed x operand
    n_out_buf = 2
    tl = _choose_tile_l(L, Cin, Cout, xb, ob,
                        n_x_buf=n_x_buf, n_out_buf=n_out_buf,
                        budget_bytes=vmem_budget_bytes)
    if tl >= L:
        tl = L            # full-extent block (allowed regardless of 128 rule)
    grid_l = pl.cdiv(L, tl)

    # v7x megacore: make sure a "parallel" axis has >= 2 blocks when N == 1.
    if N == 1 and grid_l == 1 and L > _LANE:
        tl = _round_up((L + 1) // 2, _LANE)
        if tl >= L:
            tl = max(_LANE, ((L - 1) // _LANE) * _LANE)
        grid_l = pl.cdiv(L, tl)

    out = pl.pallas_call(
        _conv1x1_bn_kernel,
        out_shape=jax.ShapeDtypeStruct((N, Cout, L), out_dtype),
        grid=(N, grid_l),
        in_specs=[
            pl.BlockSpec((1, Cin, tl), lambda n, j: (n, 0, j),
                         pipeline_mode=pl.Buffered(n_x_buf)),
            pl.BlockSpec((Cout, Cin), lambda n, j: (0, 0)),
            pl.BlockSpec((Cout, 1), lambda n, j: (0, 0)),
        ],
        out_specs=pl.BlockSpec((1, Cout, tl), lambda n, j: (n, 0, j)),
        compiler_params=pltpu.CompilerParams(
            dimension_semantics=("parallel", "parallel"),
            vmem_limit_bytes=32 * 1024 * 1024),   # ~2x headroom over the budget
    )(x2, w2, sh)
    return out.reshape(N, Cout, H, W)


# ----------------------------------------------------------------------------
# Module: parameter init + one-time BN fold + forward
# ----------------------------------------------------------------------------
def init_params(key, in_dim, out_dim):
    """Raw parameters matching nn.Conv2d(bias=False) + nn.BatchNorm2d."""
    kw, kg, kb, km, kv = jax.random.split(key, 5)
    return {
        "w": 0.1 * jax.random.normal(kw, (out_dim, in_dim, 1, 1), jnp.float32),
        "gamma": 1.0 + 0.1 * jax.random.normal(kg, (out_dim,), jnp.float32),
        "beta": 0.1 * jax.random.normal(kb, (out_dim,), jnp.float32),
        "running_mean": 0.1 * jax.random.normal(km, (out_dim,), jnp.float32),
        "running_var": 0.9 + 0.2 * jax.random.uniform(kv, (out_dim,), jnp.float32),
    }


def fold_bn_params(params, eps=_EPS):
    """One-time eval-mode BN fold: w_folded = w * gamma/sqrt(var+eps), shift = beta - mean*scale."""
    cout, cin = params["w"].shape[:2]
    w2 = params["w"].reshape(cout, cin).astype(jnp.float32)
    scale = params["gamma"] / jnp.sqrt(params["running_var"] + eps)
    shift = params["beta"] - params["running_mean"] * scale
    return {"w_folded": w2 * scale[:, None], "shift": shift}


def mapping_forward(x, folded, **kwargs):
    """Mapping.forward: preconv (1x1 conv, no bias) -> preconv_bn (BatchNorm2d, eval)."""
    return conv1x1_bn_pallas(x, folded["w_folded"], folded["shift"], **kwargs)


# ----------------------------------------------------------------------------
# Self-test
# ----------------------------------------------------------------------------
def _reference(x, params):
    """Unfused reference (exact f32 elementwise conv + explicit BN) — validates the fold."""
    cout, cin = params["w"].shape[:2]
    w2 = params["w"].reshape(cout, cin)
    conv = (w2[None, :, :, None, None] * x[:, None, :, :, :]).sum(axis=2)
    inv = 1.0 / jnp.sqrt(params["running_var"] + _EPS)
    return ((conv - params["running_mean"][None, :, None, None])
            * inv[None, :, None, None]
            * params["gamma"][None, :, None, None]
            + params["beta"][None, :, None, None])


if __name__ == "__main__":
    key = jax.random.PRNGKey(0)
    kx, kx2, kp = jax.random.split(key, 3)

    N, Cin, H, W = 2, 4, 16, 16
    Cout = 32
    x = jax.random.normal(kx, (N, Cin, H, W), jnp.float32)
    params = init_params(kp, in_dim=Cin, out_dim=Cout)
    folded = fold_bn_params(params)          # BN folded once, outside forward
    ref = _reference(x, params)

    # 1) Default path (tiny problem -> single-grid-step kernel), f32 I/O.
    fwd = jax.jit(functools.partial(mapping_forward, folded=folded))
    out = fwd(x)
    jax.block_until_ready(out)
    assert out.shape == (N, Cout, H, W), out.shape
    assert bool(jnp.all(jnp.isfinite(out)))
    assert bool(jnp.allclose(out, ref, atol=1e-3, rtol=1e-3)), float(
        jnp.max(jnp.abs(out - ref)))

    # 2) Tiled / pipelined path, forced with tiny budgets, with a ragged last
    #    spatial tile (L = 17*17 = 289 -> tiles of 128, 128, 33).
    H2 = W2 = 17
    x_big = jax.random.normal(kx2, (N, Cin, H2, W2), jnp.float32)
    ref2 = _reference(x_big, params)
    out2 = conv1x1_bn_pallas(x_big, folded["w_folded"], folded["shift"],
                             small_path_bytes=0, vmem_budget_bytes=64 * 1024)
    jax.block_until_ready(out2)
    assert out2.shape == (N, Cout, H2, W2), out2.shape
    assert bool(jnp.allclose(out2, ref2, atol=1e-3, rtol=1e-3)), float(
        jnp.max(jnp.abs(out2 - ref2)))

    # 3) bf16 I/O path (halved HBM traffic on this mem-bound kernel; f32 accumulate).
    out_bf16 = conv1x1_bn_pallas(x, folded["w_folded"], folded["shift"],
                                 compute_dtype=jnp.bfloat16)
    jax.block_until_ready(out_bf16)
    assert out_bf16.dtype == jnp.bfloat16
    assert bool(jnp.allclose(out_bf16.astype(jnp.float32), ref,
                             atol=1e-1, rtol=1e-1))

    print("KERNEL_OK")
</pallas_src>

<mosaic_0001>
module attributes {stable_mosaic.version = 11 : i64} {
  func.func @_conv1x1_bn_small_kernel(%arg0: i32, %arg1: memref<2x4x256xf32, #tpu.memory_space<vmem>>, %arg2: memref<32x4xf32, #tpu.memory_space<vmem>>, %arg3: memref<32x1xf32, #tpu.memory_space<vmem>>, %arg4: memref<2x32x256xf32, #tpu.memory_space<vmem>>) attributes {dimension_semantics = [#tpu.dimension_semantics<arbitrary>], iteration_bounds = array<i64: 1>, scalar_prefetch = 0 : i64, scratch_operands = 0 : i64, tpu.core_type = #tpu.core_type<tc>, window_params = [{pipeline_mode = #tpu.pipeline_mode<synchronous>, transform_indices = @transform_0, window_bounds = array<i64: 2, 4, 256>}, {pipeline_mode = #tpu.pipeline_mode<synchronous>, transform_indices = @transform_1, window_bounds = array<i64: 32, 4>}, {pipeline_mode = #tpu.pipeline_mode<synchronous>, transform_indices = @transform_2, window_bounds = array<i64: 32, 1>}, {pipeline_mode = #tpu.pipeline_mode<synchronous>, transform_indices = @transform_3, window_bounds = array<i64: 2, 32, 256>}]} {
    %c0 = arith.constant 0 : index
    %c0_0 = arith.constant 0 : index
    %0 = vector.load %arg2[%c0, %c0_0] : memref<32x4xf32, #tpu.memory_space<vmem>>, vector<32x4xf32>
    %c0_1 = arith.constant 0 : index
    %c0_2 = arith.constant 0 : index
    %1 = vector.load %arg3[%c0_1, %c0_2] : memref<32x1xf32, #tpu.memory_space<vmem>>, vector<32x1xf32>
    %c0_3 = arith.constant 0 : index
    %c0_4 = arith.constant 0 : index
    %c0_5 = arith.constant 0 : index
    %2 = vector.load %arg1[%c0_3, %c0_4, %c0_5] : memref<2x4x256xf32, #tpu.memory_space<vmem>>, vector<1x4x256xf32>
    %3 = vector.shape_cast %2 : vector<1x4x256xf32> to vector<4x256xf32>
    %cst = arith.constant dense<0.000000e+00> : vector<32x256xf32>
    %4 = tpu.matmul %0, %3, %cst {dimension_numbers = #tpu.dot_dimension_numbers<[1], [0], [0], [1], [0, 0, 1, 1], [], []>} : vector<32x4xf32>, vector<4x256xf32>, vector<32x256xf32> -> vector<32x256xf32>
    %5 = vector.broadcast %1 : vector<32x1xf32> to vector<32x256xf32>
    %6 = arith.addf %4, %5 : vector<32x256xf32>
    %c0_6 = arith.constant 0 : index
    %c0_7 = arith.constant 0 : index
    %c0_8 = arith.constant 0 : index
    %7 = vector.load %arg4[%c0_6, %c0_7, %c0_8] : memref<2x32x256xf32, #tpu.memory_space<vmem>>, vector<1x32x256xf32>
    %8 = vector.shape_cast %7 : vector<1x32x256xf32> to vector<32x256xf32>
    %9 = vector.shape_cast %6 : vector<32x256xf32> to vector<1x32x256xf32>
    tpu.vector_store %arg4[%c0_6, %c0_7, %c0_8], %9 {strides = array<i32>} : memref<2x32x256xf32, #tpu.memory_space<vmem>>, vector<1x32x256xf32>,
    %c1 = arith.constant 1 : index
    %c0_9 = arith.constant 0 : index
    %c0_10 = arith.constant 0 : index
    %10 = vector.load %arg1[%c1, %c0_9, %c0_10] : memref<2x4x256xf32, #tpu.memory_space<vmem>>, vector<1x4x256xf32>
    %11 = vector.shape_cast %10 : vector<1x4x256xf32> to vector<4x256xf32>
    %cst_11 = arith.constant dense<0.000000e+00> : vector<32x256xf32>
    %12 = tpu.matmul %0, %11, %cst_11 {dimension_numbers = #tpu.dot_dimension_numbers<[1], [0], [0], [1], [0, 0, 1, 1], [], []>} : vector<32x4xf32>, vector<4x256xf32>, vector<32x256xf32> -> vector<32x256xf32>
    %13 = vector.broadcast %1 : vector<32x1xf32> to vector<32x256xf32>
    %14 = arith.addf %12, %13 : vector<32x256xf32>
    %c1_12 = arith.constant 1 : index
    %c0_13 = arith.constant 0 : index
    %c0_14 = arith.constant 0 : index
    %15 = vector.load %arg4[%c1_12, %c0_13, %c0_14] : memref<2x32x256xf32, #tpu.memory_space<vmem>>, vector<1x32x256xf32>
    %16 = vector.shape_cast %15 : vector<1x32x256xf32> to vector<32x256xf32>
    %17 = vector.shape_cast %14 : vector<32x256xf32> to vector<1x32x256xf32>
    tpu.vector_store %arg4[%c1_12, %c0_13, %c0_14], %17 {strides = array<i32>} : memref<2x32x256xf32, #tpu.memory_space<vmem>>, vector<1x32x256xf32>,
    return
  }
  func.func @transform_0(%arg0: i32) -> (i32, i32, i32) {
    %c0_i32 = arith.constant 0 : i32
    %c0_i32_0 = arith.constant 0 : i32
    %c0_i32_1 = arith.constant 0 : i32
    %c0_i32_2 = arith.constant 0 : i32
    return %c0_i32, %c0_i32_0, %c0_i32_1 : i32, i32, i32
  }
  func.func @transform_1(%arg0: i32) -> (i32, i32) {
    %c0_i32 = arith.constant 0 : i32
    %c0_i32_0 = arith.constant 0 : i32
    %c0_i32_1 = arith.constant 0 : i32
    return %c0_i32, %c0_i32_0 : i32, i32
  }
  func.func @transform_2(%arg0: i32) -> (i32, i32) {
    %c0_i32 = arith.constant 0 : i32
    %c0_i32_0 = arith.constant 0 : i32
    %c0_i32_1 = arith.constant 0 : i32
    return %c0_i32, %c0_i32_0 : i32, i32
  }
  func.func @transform_3(%arg0: i32) -> (i32, i32, i32) {
    %c0_i32 = arith.constant 0 : i32
    %c0_i32_0 = arith.constant 0 : i32
    %c0_i32_1 = arith.constant 0 : i32
    %c0_i32_2 = arith.constant 0 : i32
    return %c0_i32, %c0_i32_0, %c0_i32_1 : i32, i32, i32
  }
}

</mosaic_0001>

<llo_original>
// kernel: mapping_forward.1
$region0: #{mapping_forward.1}
  #allocation0 [shape = 'u32[]', space=smem, size = 0x4, offset = 0x4, fixed_abs, tag = 'smem constant byte address 0x4 - core index']
  #allocation1 [shape = 'u32[144,128]{1,0:T(1,128)}', space=vmem, size = 0x12000, scoped, tag = 'internal scratch']
  %s0 = inlined_call_operand.vmem [shape: f32[2,4,256], index: 0, kind: input, shape index: {}]
  %s1 = inlined_call_operand.vmem [shape: f32[32,4], index: 1, kind: input, shape index: {}]
  %s2 = inlined_call_operand.vmem [shape: f32[32,1], index: 2, kind: input, shape index: {}]
  %s3 = inlined_call_operand.vmem [shape: f32[2,32,256], index: 3, kind: output, shape index: {}]
  %s4 = sld [smem:[#allocation0]]
  $region22: #{mapping_forward.1} parent=0
    _
  %s6 = ssub.s32 1, %s4
  %s7 = scalar_select 0, %s6, %s4
  // Predicated region
  $region2: #{mapping_forward.1} parent=0 // pred_check
    _
  $region3: #{mapping_forward.1} parent=0 // pred_check_branch
    %9 = sbr.rel (0) target = $region5
  $region4: #{mapping_forward.1} parent=0 // pred_region
    _
  $region5: #{mapping_forward.1} parent=0 // pred_fallthru
    _
  // Predicated region
  $region6: #{mapping_forward.1} parent=0 // pred_check
    _
  $region7: #{mapping_forward.1} parent=0 // pred_check_branch
    %11 = sbr.rel (0) target = $region9
  $region8: #{mapping_forward.1} parent=0 // pred_region
    _
  $region9: #{mapping_forward.1} parent=0 // pred_fallthru
    _
  // Predicated region
  $region10: #{mapping_forward.1} parent=0 // pred_check
    _
  $region11: #{mapping_forward.1} parent=0 // pred_check_branch
    %13 = sbr.rel (0) target = $region13
  $region12: #{mapping_forward.1} parent=0 // pred_region
    _
  $region13: #{mapping_forward.1} parent=0 // pred_fallthru
    _
  %v14 = vld [vmem:[%s1] sm:$0xff]
  %v15 = vld [vmem:[%s1 + $0x8] sm:$0xff]
  %v16 = vld [vmem:[%s1 + $0x10] sm:$0xff]
  %v17 = vld [vmem:[%s1 + $0x18] sm:$0xff]
  %v18 = vld [vmem:[%s2] sm:$0xff]
  %v19 = vld [vmem:[%s2 + $0x8] sm:$0xff]
  %v20 = vld [vmem:[%s2 + $0x10] sm:$0xff]
  %v21 = vld [vmem:[%s2 + $0x18] sm:$0xff]
  %v22 = vld [vmem:[%s0] sm:$0xff]
  %24 = vset.pattern.permute.xlu0 0
  %25 = vperm.xlu0 %24, %v18
  %v26 = vpop.permute.xlu0 %25
  %29 = vset.pattern.permute.xlu0 0
  %30 = vperm.xlu0 %29, %v19
  %v31 = vpop.permute.xlu0 %30
  %34 = vset.pattern.permute.xlu0 0
  %35 = vperm.xlu0 %34, %v20
  %v36 = vpop.permute.xlu0 %35
  %39 = vset.pattern.permute.xlu0 0
  %40 = vperm.xlu0 %39, %v21
  %v41 = vpop.permute.xlu0 %40
  %v44 = vcombine.high %v22, %v22
  %vm45 = vcmask 31744
  %v47 = vsel %vm45, %v14, 0
  %v50 = vsel %vm45, %v15, 0
  %v53 = vsel %vm45, %v16, 0
  %v56 = vsel %vm45, %v17, 0
  %vm58 = vcmask 1043456
  %v59 = vsel %vm58, %v22, 0
  %v61 = vsel %vm58, %v44, 0
  %63 = vmatprep.subr.mxu0 %v61
  %64 = vmatpush1.msra.mxu0 %v59
  %65 = vmatprep.subr.mxu0 0.0
  %66 = vmatpush1.msra.mxu0 0.0
  %67 = vmatprep.subr.mxu0 0.0
  %68 = vmatpush1.msra.mxu0 0.0
  %69 = vmatprep.subr.mxu0 0.0
  %70 = vmatpush1.msra.mxu0 0.0
  %71 = vmatprep.subr.mxu0 0.0
  %72 = vmatpush1.msra.mxu0 0.0
  %73 = vmatprep.subr.mxu0 0.0
  %74 = vmatpush1.msra.mxu0 0.0
  %75 = vmatprep.subr.mxu0 0.0
  %76 = vmatpush1.msra.mxu0 0.0
  %77 = vmatprep.subr.mxu0 0.0
  %78 = vmatpush1.msra.mxu0 0.0
  %79 = vmatprep.subr.mxu0 0.0
  %80 = vmatpush1.msra.mxu0 0.0
  %81 = vmatprep.subr.mxu0 0.0
  %82 = vmatpush1.msra.mxu0 0.0
  %83 = vmatprep.subr.mxu0 0.0
  %84 = vmatpush1.msra.mxu0 0.0
  %85 = vmatprep.subr.mxu0 0.0
  %86 = vmatpush1.msra.mxu0 0.0
  %87 = vmatprep.subr.mxu0 0.0
  %88 = vmatpush1.msra.mxu0 0.0
  %89 = vmatprep.subr.mxu0 0.0
  %90 = vmatpush1.msra.mxu0 0.0
  %91 = vmatprep.subr.mxu0 0.0
  %92 = vmatpush1.msra.mxu0 0.0
  %93 = vmatprep.subr.mxu0 0.0
  %94 = vmatpush1.msra.mxu0 0.0
  %95 = vmatprep.subr.mxu0 0.0
  %96 = vmatpush1.msra.mxu0 0.0
  %97 = vmatprep.subr.mxu0 0.0
  %98 = vmatpush1.msra.mxu0 0.0
  %99 = vmatprep.subr.mxu0 0.0
  %100 = vmatpush1.msra.mxu0 0.0
  %101 = vmatprep.subr.mxu0 0.0
  %102 = vmatpush1.msra.mxu0 0.0
  %103 = vmatprep.subr.mxu0 0.0
  %104 = vmatpush1.msra.mxu0 0.0
  %105 = vmatprep.subr.mxu0 0.0
  %106 = vmatpush1.msra.mxu0 0.0
  %107 = vmatprep.subr.mxu0 0.0
  %108 = vmatpush1.msra.mxu0 0.0
  %109 = vmatprep.subr.mxu0 0.0
  %110 = vmatpush1.msra.mxu0 0.0
  %111 = vmatprep.subr.mxu0 0.0
  %112 = vmatpush1.msra.mxu0 0.0
  %113 = vmatprep.subr.mxu0 0.0
  %114 = vmatpush1.msra.mxu0 0.0
  %115 = vmatprep.subr.mxu0 0.0
  %116 = vmatpush1.msra.mxu0 0.0
  %117 = vmatprep.subr.mxu0 0.0
  %118 = vmatpush1.msra.mxu0 0.0
  %119 = vmatprep.subr.mxu0 0.0
  %120 = vmatpush1.msra.mxu0 0.0
  %121 = vmatprep.subr.mxu0 0.0
  %122 = vmatpush1.msra.mxu0 0.0
  %123 = vmatprep.subr.mxu0 0.0
  %124 = vmatpush1.msra.mxu0 0.0
  %125 = vmatprep.subr.mxu0 0.0
  %126 = vmatpush1.msra.mxu0 0.0
  %127 = vmatprep.mubr.f32.mxu0 0.0
  %128 = vmatmul.mubr.f32.gmra.mrb[0].mxu0 %v47
  %v129 = vpop.f32.mrb[0].mxu0
  %v130 = vadd.f32 %v26, %v129
  %v131 = vpop.f32.mrb[0].mxu0
  %v132 = vadd.f32 %v26, %v131
  %133 = vmatprep.mubr.f32.mxu0 0.0
  %134 = vmatmul.mubr.f32.gmra.mrb[0].mxu0 %v50
  %v135 = vpop.f32.mrb[0].mxu0
  %v136 = vadd.f32 %v31, %v135
  %v137 = vpop.f32.mrb[0].mxu0
  %v138 = vadd.f32 %v31, %v137
  %139 = vmatprep.mubr.f32.mxu0 0.0
  %140 = vmatmul.mubr.f32.gmra.mrb[0].mxu0 %v53
  %v141 = vpop.f32.mrb[0].mxu0
  %v142 = vadd.f32 %v36, %v141
  %v143 = vpop.f32.mrb[0].mxu0
  %v144 = vadd.f32 %v36, %v143
  %145 = vmatprep.mubr.f32.mxu0 0.0
  %146 = vmatmul.mubr.f32.gmra.mrb[0].mxu0 %v56
  %v147 = vpop.f32.mrb[0].mxu0
  %v148 = vadd.f32 %v41, %v147
  %v149 = vpop.f32.mrb[0].mxu0
  %v150 = vadd.f32 %v41, %v149
  %151 = vdwg.mxu0
  %152 = vst [vmem:[%s3] sm:$0xff] %v130
  %153 = vst [vmem:[%s3 + $0x8] sm:$0xff] %v132
  %154 = vst [vmem:[%s3 + $0x10] sm:$0xff] %v136
  %155 = vst [vmem:[%s3 + $0x18] sm:$0xff] %v138
  %156 = vst [vmem:[%s3 + $0x20] sm:$0xff] %v142
  %157 = vst [vmem:[%s3 + $0x28] sm:$0xff] %v144
  %158 = vst [vmem:[%s3 + $0x30] sm:$0xff] %v148
  %159 = vst [vmem:[%s3 + $0x38] sm:$0xff] %v150
  %s160 = scalar_lea.vmem %s0, 8
  %v161 = vld [vmem:[%s160] sm:$0xff]
  %v163 = vcombine.high %v161, %v161
  %v164 = vsel %vm58, %v161, 0
  %v166 = vsel %vm58, %v163, 0
  %168 = vmatprep.subr.mxu0 %v166
  %169 = vmatpush1.msra.mxu0 %v164
  %170 = vmatprep.subr.mxu0 0.0
  %171 = vmatpush1.msra.mxu0 0.0
  %172 = vmatprep.subr.mxu0 0.0
  %173 = vmatpush1.msra.mxu0 0.0
  %174 = vmatprep.subr.mxu0 0.0
  %175 = vmatpush1.msra.mxu0 0.0
  %176 = vmatprep.subr.mxu0 0.0
  %177 = vmatpush1.msra.mxu0 0.0
  %178 = vmatprep.subr.mxu0 0.0
  %179 = vmatpush1.msra.mxu0 0.0
  %180 = vmatprep.subr.mxu0 0.0
  %181 = vmatpush1.msra.mxu0 0.0
  %182 = vmatprep.subr.mxu0 0.0
  %183 = vmatpush1.msra.mxu0 0.0
  %184 = vmatprep.subr.mxu0 0.0
  %185 = vmatpush1.msra.mxu0 0.0
  %186 = vmatprep.subr.mxu0 0.0
  %187 = vmatpush1.msra.mxu0 0.0
  %188 = vmatprep.subr.mxu0 0.0
  %189 = vmatpush1.msra.mxu0 0.0
  %190 = vmatprep.subr.mxu0 0.0
  %191 = vmatpush1.msra.mxu0 0.0
  %192 = vmatprep.subr.mxu0 0.0
  %193 = vmatpush1.msra.mxu0 0.0
  %194 = vmatprep.subr.mxu0 0.0
  %195 = vmatpush1.msra.mxu0 0.0
  %196 = vmatprep.subr.mxu0 0.0
  %197 = vmatpush1.msra.mxu0 0.0
  %198 = vmatprep.subr.mxu0 0.0
  %199 = vmatpush1.msra.mxu0 0.0
  %200 = vmatprep.subr.mxu0 0.0
  %201 = vmatpush1.msra.mxu0 0.0
  %202 = vmatprep.subr.mxu0 0.0
  %203 = vmatpush1.msra.mxu0 0.0
  %204 = vmatprep.subr.mxu0 0.0
  %205 = vmatpush1.msra.mxu0 0.0
  %206 = vmatprep.subr.mxu0 0.0
  %207 = vmatpush1.msra.mxu0 0.0
  %208 = vmatprep.subr.mxu0 0.0
  %209 = vmatpush1.msra.mxu0 0.0
  %210 = vmatprep.subr.mxu0 0.0
  %211 = vmatpush1.msra.mxu0 0.0
  %212 = vmatprep.subr.mxu0 0.0
  %213 = vmatpush1.msra.mxu0 0.0
  %214 = vmatprep.subr.mxu0 0.0
  %215 = vmatpush1.msra.mxu0 0.0
  %216 = vmatprep.subr.mxu0 0.0
  %217 = vmatpush1.msra.mxu0 0.0
  %218 = vmatprep.subr.mxu0 0.0
  %219 = vmatpush1.msra.mxu0 0.0
  %220 = vmatprep.subr.mxu0 0.0
  %221 = vmatpush1.msra.mxu0 0.0
  %222 = vmatprep.subr.mxu0 0.0
  %223 = vmatpush1.msra.mxu0 0.0
  %224 = vmatprep.subr.mxu0 0.0
  %225 = vmatpush1.msra.mxu0 0.0
  %226 = vmatprep.subr.mxu0 0.0
  %227 = vmatpush1.msra.mxu0 0.0
  %228 = vmatprep.subr.mxu0 0.0
  %229 = vmatpush1.msra.mxu0 0.0
  %230 = vmatprep.subr.mxu0 0.0
  %231 = vmatpush1.msra.mxu0 0.0
  %232 = vmatprep.mubr.f32.mxu0 0.0
  %233 = vmatmul.mubr.f32.gmra.mrb[0].mxu0 %v47
  %v234 = vpop.f32.mrb[0].mxu0
  %v235 = vadd.f32 %v26, %v234
  %v236 = vpop.f32.mrb[0].mxu0
  %v237 = vadd.f32 %v26, %v236
  %238 = vmatprep.mubr.f32.mxu0 0.0
  %239 = vmatmul.mubr.f32.gmra.mrb[0].mxu0 %v50
  %v240 = vpop.f32.mrb[0].mxu0
  %v241 = vadd.f32 %v31, %v240
  %v242 = vpop.f32.mrb[0].mxu0
  %v243 = vadd.f32 %v31, %v242
  %244 = vmatprep.mubr.f32.mxu0 0.0
  %245 = vmatmul.mubr.f32.gmra.mrb[0].mxu0 %v53
  %v246 = vpop.f32.mrb[0].mxu0
  %v247 = vadd.f32 %v36, %v246
  %v248 = vpop.f32.mrb[0].mxu0
  %v249 = vadd.f32 %v36, %v248
  %250 = vmatprep.mubr.f32.mxu0 0.0
  %251 = vmatmul.mubr.f32.gmra.mrb[0].mxu0 %v56
  %v252 = vpop.f32.mrb[0].mxu0
  %v253 = vadd.f32 %v41, %v252
  %v254 = vpop.f32.mrb[0].mxu0
  %v255 = vadd.f32 %v41, %v254
  %256 = vdwg.mxu0
  %s257 = scalar_lea.vmem %s3, 64
  %258 = vst [vmem:[%s257] sm:$0xff] %v235
  %259 = vst [vmem:[%s257 + $0x8] sm:$0xff] %v237
  %260 = vst [vmem:[%s257 + $0x10] sm:$0xff] %v241
  %261 = vst [vmem:[%s257 + $0x18] sm:$0xff] %v243
  %262 = vst [vmem:[%s257 + $0x20] sm:$0xff] %v247
  %263 = vst [vmem:[%s257 + $0x28] sm:$0xff] %v249
  %264 = vst [vmem:[%s257 + $0x30] sm:$0xff] %v253
  %265 = vst [vmem:[%s257 + $0x38] sm:$0xff] %v255
  // Predicated region
  $region14: #{mapping_forward.1} parent=0 // pred_check
    _
  $region15: #{mapping_forward.1} parent=0 // pred_check_branch
    %267 = sbr.rel (0) target = $region17
  $region16: #{mapping_forward.1} parent=0 // pred_region
    _
  $region17: #{mapping_forward.1} parent=0 // pred_fallthru
    _
  // Predicated region
  $region18: #{mapping_forward.1} parent=0 // pred_check
    _
  $region19: #{mapping_forward.1} parent=0 // pred_check_branch
    %269 = sbr.rel (0) target = $region21
  $region20: #{mapping_forward.1} parent=0 // pred_region
    _
  $region21: #{mapping_forward.1} parent=0 // pred_fallthru
    _

</llo_original>
